<compile_context>
chip_gen: v7x
topology: tpu7x:2x2x1
jax: 0.10.0
libtpu: 0.0.40
codegen_flags: <defaults>
</compile_context>

<pallas_src>
import math
import functools

import jax
import jax.numpy as jnp
from jax.experimental import pallas as pl
from jax.experimental.pallas import tpu as pltpu


# ------------------------------ tile helpers -------------------------------
def _pick_tile(n, target, align):
    """Largest tile <= target that divides n and respects `align` (or full n)."""
    if n <= target:
        return n
    t = (target // align) * align
    while t >= align:
        if n % t == 0:
            return t
        t -= align
    return n


def _pick_head_group(num_heads, head_dim, lane=128, cap=512):
    """Heads per attention block: smallest divisor giving a 128-multiple lane
    width (<= cap); fall back to all heads (full hidden dim is always legal)."""
    for g in range(1, num_heads):
        if num_heads % g:
            continue
        w = g * head_dim
        if w % lane == 0 and w <= cap:
            return g
    return num_heads


# ------------------------- tiled (batched) linear ---------------------------
def _linear_kernel(x_ref, w_ref, b_ref, o_ref, acc_ref, *, mxu_dtype):
    # x: (1, tm, tk), w: (1, tk, tn), b: (1, 1, tn), o: (1, tm, tn)
    k = pl.program_id(3)

    @pl.when(k == 0)
    def _init():
        acc_ref[...] = jnp.zeros_like(acc_ref)

    acc_ref[...] += jnp.dot(
        x_ref[0].astype(mxu_dtype), w_ref[0].astype(mxu_dtype),
        preferred_element_type=jnp.float32)

    @pl.when(k == pl.num_programs(3) - 1)
    def _finalize():
        o_ref[0] = (acc_ref[...] + b_ref[0]).astype(o_ref.dtype)


def batched_linear(x, w, b, *, tm=256, tn=256, tk=512,
                   mxu_dtype=jnp.float32):
    """x: (P, M, K) @ w: (P, K, N) + b: (P, 1, N) -> (P, M, N).

    One tiled, pipelined pallas_call handles all P projections (P=3 fuses the
    Q/K/V projections into a single kernel launch)."""
    P, M, K = x.shape
    N = w.shape[2]
    tm = _pick_tile(M, tm, 8)
    tn = _pick_tile(N, tn, 128)
    tk = _pick_tile(K, tk, 128)
    grid = (P, M // tm, N // tn, K // tk)

    kernel = functools.partial(_linear_kernel, mxu_dtype=mxu_dtype)
    cost = pl.CostEstimate(
        flops=2 * P * M * N * K,
        transcendentals=0,
        bytes_accessed=4 * (P * M * K + P * K * N + P * M * N + P * N),
    )
    return pl.pallas_call(
        kernel,
        out_shape=jax.ShapeDtypeStruct((P, M, N), x.dtype),
        grid_spec=pltpu.PrefetchScalarGridSpec(
            num_scalar_prefetch=0,
            grid=grid,
            in_specs=[
                pl.BlockSpec((1, tm, tk), lambda p, i, j, k: (p, i, k)),
                pl.BlockSpec((1, tk, tn), lambda p, i, j, k: (p, k, j)),
                pl.BlockSpec((1, 1, tn), lambda p, i, j, k: (p, 0, j)),
            ],
            out_specs=pl.BlockSpec((1, tm, tn), lambda p, i, j, k: (p, i, j)),
            scratch_shapes=[pltpu.VMEM((tm, tn), jnp.float32)],
        ),
        compiler_params=pltpu.CompilerParams(
            dimension_semantics=("parallel", "parallel", "parallel",
                                 "arbitrary"),
            vmem_limit_bytes=64 * 1024 * 1024,
        ),
        cost_estimate=cost,
    )(x, w, b)


# ------------------ flash attention over the (B, S, H) layout ---------------
def _flash_attn_kernel(q_ref, k_ref, v_ref, m_ref, o_ref,
                       m_sc, l_sc, acc_sc, *,
                       scale, head_dim, heads_per_block, mxu_dtype):
    # q_ref/o_ref: (1, tq, G*dh); k_ref/v_ref: (1, tk, G*dh); m_ref: (1, 1, tk)
    ki = pl.program_id(3)
    n_kv = pl.num_programs(3)
    dh = head_dim
    G = heads_per_block

    @pl.when(ki == 0)
    def _init():
        m_sc[...] = jnp.full_like(m_sc, -jnp.inf)
        l_sc[...] = jnp.zeros_like(l_sc)
        acc_sc[...] = jnp.zeros_like(acc_sc)

    mask = m_ref[0]  # (1, tk) additive mask, broadcasts over query rows

    for h in range(G):  # heads within this lane-dense block (static unroll)
        sl = slice(h * dh, (h + 1) * dh)
        # scale folded into q: O(tq*dh) multiplies instead of O(tq*tk)
        qh = (q_ref[0, :, sl] * scale).astype(mxu_dtype)   # (tq, dh)
        kh = k_ref[0, :, sl].astype(mxu_dtype)             # (tk, dh)
        vh = v_ref[0, :, sl].astype(mxu_dtype)             # (tk, dh)

        # contract last dims of q and k -> no k transpose / XLU relayout
        s = jax.lax.dot_general(
            qh, kh, (((1,), (1,)), ((), ())),
            preferred_element_type=jnp.float32)            # (tq, tk)
        s = s + mask

        # online softmax (numerically stable across KV tiles)
        m_prev = m_sc[h]                                   # (tq, 1)
        m_new = jnp.maximum(m_prev, jnp.max(s, axis=-1, keepdims=True))
        alpha = jnp.exp(m_prev - m_new)
        p = jnp.exp(s - m_new)                             # (tq, tk)
        l_sc[h] = alpha * l_sc[h] + jnp.sum(p, axis=-1, keepdims=True)
        acc_sc[h] = alpha * acc_sc[h] + jnp.dot(
            p.astype(mxu_dtype), vh, preferred_element_type=jnp.float32)
        m_sc[h] = m_new

    @pl.when(ki == n_kv - 1)
    def _finalize():
        # TODO(synk): attention-probs dropout omitted (eval/inference semantics)
        for h in range(G):
            sl = slice(h * dh, (h + 1) * dh)
            inv_l = pl.reciprocal(l_sc[h], approx=True)    # EUP slot, ~free
            o_ref[0, :, sl] = (acc_sc[h] * inv_l).astype(o_ref.dtype)


def multi_head_attention(q, k, v, mask, *, num_heads, head_dim,
                         tq_target=512, tk_target=512,
                         mxu_dtype=jnp.float32):
    """q/k/v: (B, S, H) in head-interleaved hidden layout; mask: (B, 1, S)
    additive. Returns (B, S, H) context — no split/merge-head HBM transposes;
    heads are column slices chosen by the BlockSpec index_map."""
    B, S, H = q.shape
    G = _pick_head_group(num_heads, head_dim)
    n_groups = num_heads // G
    gw = G * head_dim                       # lane width of one block
    tq = _pick_tile(S, tq_target, 8)
    tk = _pick_tile(S, tk_target, 128)      # also last dim of the mask block

    scale = 1.0 / math.sqrt(head_dim)
    kernel = functools.partial(_flash_attn_kernel, scale=scale,
                               head_dim=head_dim, heads_per_block=G,
                               mxu_dtype=mxu_dtype)
    cost = pl.CostEstimate(
        flops=4 * B * num_heads * S * S * head_dim,
        transcendentals=B * num_heads * S * S,
        bytes_accessed=4 * (4 * B * S * H + B * S),
    )
    grid = (B, n_groups, S // tq, S // tk)
    return pl.pallas_call(
        kernel,
        out_shape=jax.ShapeDtypeStruct((B, S, H), q.dtype),
        grid_spec=pltpu.PrefetchScalarGridSpec(
            num_scalar_prefetch=0,
            grid=grid,
            in_specs=[
                pl.BlockSpec((1, tq, gw), lambda b, g, qi, ki: (b, qi, g)),
                pl.BlockSpec((1, tk, gw), lambda b, g, qi, ki: (b, ki, g)),
                pl.BlockSpec((1, tk, gw), lambda b, g, qi, ki: (b, ki, g)),
                pl.BlockSpec((1, 1, tk), lambda b, g, qi, ki: (b, 0, ki)),
            ],
            out_specs=pl.BlockSpec((1, tq, gw),
                                   lambda b, g, qi, ki: (b, qi, g)),
            scratch_shapes=[
                pltpu.VMEM((G, tq, 1), jnp.float32),          # running max
                pltpu.VMEM((G, tq, 1), jnp.float32),          # running denom
                pltpu.VMEM((G, tq, head_dim), jnp.float32),   # accumulator
            ],
        ),
        compiler_params=pltpu.CompilerParams(
            dimension_semantics=("parallel", "parallel", "parallel",
                                 "arbitrary"),
            vmem_limit_bytes=64 * 1024 * 1024,
        ),
        cost_estimate=cost,
    )(q, k, v, mask)


# ---------------------------- Module wrapper -------------------------------
class AttentionParams:
    def __init__(self, key, hidden_size, num_heads, initializer_range=0.02):
        self.hidden_size = hidden_size
        self.num_heads = num_heads
        self.head_dim = hidden_size // num_heads
        ks = jax.random.split(key, 4)
        std = initializer_range
        # weights stored as (in_features, out_features)
        self.wq = jax.random.normal(ks[0], (hidden_size, hidden_size), jnp.float32) * std
        self.wk = jax.random.normal(ks[1], (hidden_size, hidden_size), jnp.float32) * std
        self.wv = jax.random.normal(ks[2], (hidden_size, hidden_size), jnp.float32) * std
        self.wo = jax.random.normal(ks[3], (hidden_size, hidden_size), jnp.float32) * std
        self.bq = jnp.zeros((hidden_size,), jnp.float32)
        self.bk = jnp.zeros((hidden_size,), jnp.float32)
        self.bv = jnp.zeros((hidden_size,), jnp.float32)
        self.bo = jnp.zeros((hidden_size,), jnp.float32)


def attention_forward(params, q, k, v, attention_mask, *,
                      mxu_dtype=jnp.float32):
    """q,k,v: (B, S, hidden); attention_mask: (B, 1, S) additive.

    Set mxu_dtype=jnp.bfloat16 for 2x MXU throughput / half the tile bytes;
    softmax & accumulation stay in f32 either way."""
    B, S, H = q.shape
    nH, dh = params.num_heads, params.head_dim

    # Fused Q/K/V projection: one tiled+pipelined kernel for all three
    # (handles cross-attention where q, k, v differ).
    x_stack = jnp.stack([q, k, v]).reshape(3, B * S, H)
    w_stack = jnp.stack([params.wq, params.wk, params.wv])          # (3, H, H)
    b_stack = jnp.stack([params.bq, params.bk, params.bv]).reshape(3, 1, H)
    qkv = batched_linear(x_stack, w_stack, b_stack, mxu_dtype=mxu_dtype)
    qkv = qkv.reshape(3, B, S, H)
    mq, mk, mv = qkv[0], qkv[1], qkv[2]

    # Flash attention directly on the (B, S, H) layout — heads picked by
    # BlockSpec column slices, so no split/merge-head HBM transposes.
    ctx = multi_head_attention(mq, mk, mv, attention_mask,
                               num_heads=nH, head_dim=dh,
                               mxu_dtype=mxu_dtype)

    # output projection
    out = batched_linear(ctx.reshape(1, B * S, H),
                         params.wo[None], params.bo.reshape(1, 1, H),
                         mxu_dtype=mxu_dtype)
    return out.reshape(B, S, H)


# ------------------------------- reference ---------------------------------
def attention_reference(params, q, k, v, attention_mask):
    B, S, H = q.shape
    nH, dh = params.num_heads, params.head_dim
    mq = q @ params.wq + params.bq
    mk = k @ params.wk + params.bk
    mv = v @ params.wv + params.bv

    def split_heads(x):
        return x.reshape(B, S, nH, dh).transpose(0, 2, 1, 3)

    qh, kh, vh = split_heads(mq), split_heads(mk), split_heads(mv)
    scores = jnp.einsum("bhqd,bhkd->bhqk", qh, kh) / math.sqrt(dh)
    scores = scores + attention_mask[:, None, :, :]   # (B,1,1,S) broadcast
    probs = jax.nn.softmax(scores, axis=-1)
    ctx = jnp.einsum("bhqk,bhkd->bhqd", probs, vh)
    ctx = ctx.transpose(0, 2, 1, 3).reshape(B, S, H)
    return ctx @ params.wo + params.bo


# --------------------------------- main -------------------------------------
if __name__ == "__main__":
    B, S, hidden, num_heads = 2, 8, 32, 4
    key = jax.random.PRNGKey(0)
    kp, kq, kk, kv, km = jax.random.split(key, 5)

    params = AttentionParams(kp, hidden, num_heads, initializer_range=0.02)

    q = jax.random.normal(kq, (B, S, hidden), jnp.float32)
    k = jax.random.normal(kk, (B, S, hidden), jnp.float32)
    v = jax.random.normal(kv, (B, S, hidden), jnp.float32)
    # additive attention mask: 0 for keep, -1e4 for masked key positions
    keep = jax.random.bernoulli(km, 0.75, (B, 1, S))
    attention_mask = jnp.where(keep, 0.0, -1e4).astype(jnp.float32)

    out = attention_forward(params, q, k, v, attention_mask)
    out = jax.block_until_ready(out)

    ref = attention_reference(params, q, k, v, attention_mask)
    assert out.shape == (B, S, hidden)
    # tolerance allows the approximate (EUP) reciprocal in the softmax denom
    assert jnp.allclose(out, ref, atol=2e-3, rtol=2e-3), "mismatch vs reference"

    print("KERNEL_OK")
</pallas_src>

<mosaic_0001>
module attributes {stable_mosaic.version = 11 : i64} {
  func.func @_linear_kernel(%arg0: i32, %arg1: i32, %arg2: i32, %arg3: i32, %arg4: memref<1x16x32xf32, #tpu.memory_space<vmem>>, %arg5: memref<1x32x32xf32, #tpu.memory_space<vmem>>, %arg6: memref<1x1x32xf32, #tpu.memory_space<vmem>>, %arg7: memref<1x16x32xf32, #tpu.memory_space<vmem>>, %arg8: memref<16x32xf32, #tpu.memory_space<vmem>>) attributes {dimension_semantics = [#tpu.dimension_semantics<parallel>, #tpu.dimension_semantics<parallel>, #tpu.dimension_semantics<parallel>, #tpu.dimension_semantics<arbitrary>], iteration_bounds = array<i64: 3, 1, 1, 1>, scalar_prefetch = 0 : i64, scratch_operands = 1 : i64, tpu.core_type = #tpu.core_type<tc>, window_params = [{transform_indices = @transform_0, window_bounds = array<i64: 1, 16, 32>}, {transform_indices = @transform_1, window_bounds = array<i64: 1, 32, 32>}, {transform_indices = @transform_2, window_bounds = array<i64: 1, 1, 32>}, {transform_indices = @transform_3, window_bounds = array<i64: 1, 16, 32>}]} {
    %c0_i32 = arith.constant 0 : i32
    %0 = arith.cmpi eq, %arg3, %c0_i32 : i32
    %1 = arith.extui %0 : i1 to i32
    %c0_i32_0 = arith.constant 0 : i32
    %2 = arith.cmpi ne, %1, %c0_i32_0 : i32
    scf.if %2 {
      %cst_12 = arith.constant 0.000000e+00 : f32
      %14 = vector.broadcast %cst_12 : f32 to vector<16x32xf32>
      %c0_13 = arith.constant 0 : index
      %c0_14 = arith.constant 0 : index
      %15 = vector.load %arg8[%c0_13, %c0_14] : memref<16x32xf32, #tpu.memory_space<vmem>>, vector<16x32xf32>
      tpu.vector_store %arg8[%c0_13, %c0_14], %14 {strides = array<i32>} : memref<16x32xf32, #tpu.memory_space<vmem>>, vector<16x32xf32>,
    } else {
    }
    %c0 = arith.constant 0 : index
    %c0_1 = arith.constant 0 : index
    %3 = vector.load %arg8[%c0, %c0_1] : memref<16x32xf32, #tpu.memory_space<vmem>>, vector<16x32xf32>
    %c0_2 = arith.constant 0 : index
    %c0_3 = arith.constant 0 : index
    %c0_4 = arith.constant 0 : index
    %4 = vector.load %arg4[%c0_2, %c0_3, %c0_4] : memref<1x16x32xf32, #tpu.memory_space<vmem>>, vector<1x16x32xf32>
    %5 = vector.shape_cast %4 : vector<1x16x32xf32> to vector<16x32xf32>
    %c0_5 = arith.constant 0 : index
    %c0_6 = arith.constant 0 : index
    %c0_7 = arith.constant 0 : index
    %6 = vector.load %arg5[%c0_5, %c0_6, %c0_7] : memref<1x32x32xf32, #tpu.memory_space<vmem>>, vector<1x32x32xf32>
    %7 = vector.shape_cast %6 : vector<1x32x32xf32> to vector<32x32xf32>
    %cst = arith.constant dense<0.000000e+00> : vector<16x32xf32>
    %8 = tpu.matmul %5, %7, %cst {dimension_numbers = #tpu.dot_dimension_numbers<[1], [0], [0], [1], [0, 0, 1, 1], [], []>} : vector<16x32xf32>, vector<32x32xf32>, vector<16x32xf32> -> vector<16x32xf32>
    %9 = arith.addf %3, %8 : vector<16x32xf32>
    %c0_8 = arith.constant 0 : index
    %c0_9 = arith.constant 0 : index
    %10 = vector.load %arg8[%c0_8, %c0_9] : memref<16x32xf32, #tpu.memory_space<vmem>>, vector<16x32xf32>
    tpu.vector_store %arg8[%c0_8, %c0_9], %9 {strides = array<i32>} : memref<16x32xf32, #tpu.memory_space<vmem>>, vector<16x32xf32>,
    %c0_i32_10 = arith.constant 0 : i32
    %11 = arith.cmpi eq, %arg3, %c0_i32_10 : i32
    %12 = arith.extui %11 : i1 to i32
    %c0_i32_11 = arith.constant 0 : i32
    %13 = arith.cmpi ne, %12, %c0_i32_11 : i32
    scf.if %13 {
      %c0_12 = arith.constant 0 : index
      %c0_13 = arith.constant 0 : index
      %14 = vector.load %arg8[%c0_12, %c0_13] : memref<16x32xf32, #tpu.memory_space<vmem>>, vector<16x32xf32>
      %c0_14 = arith.constant 0 : index
      %c0_15 = arith.constant 0 : index
      %c0_16 = arith.constant 0 : index
      %15 = vector.load %arg6[%c0_14, %c0_15, %c0_16] : memref<1x1x32xf32, #tpu.memory_space<vmem>>, vector<1x1x32xf32>
      %16 = vector.shape_cast %15 : vector<1x1x32xf32> to vector<1x32xf32>
      %17 = vector.broadcast %16 : vector<1x32xf32> to vector<16x32xf32>
      %18 = arith.addf %14, %17 : vector<16x32xf32>
      %c0_17 = arith.constant 0 : index
      %c0_18 = arith.constant 0 : index
      %c0_19 = arith.constant 0 : index
      %19 = vector.load %arg7[%c0_17, %c0_18, %c0_19] : memref<1x16x32xf32, #tpu.memory_space<vmem>>, vector<1x16x32xf32>
      %20 = vector.shape_cast %19 : vector<1x16x32xf32> to vector<16x32xf32>
      %21 = vector.shape_cast %18 : vector<16x32xf32> to vector<1x16x32xf32>
      tpu.vector_store %arg7[%c0_17, %c0_18, %c0_19], %21 {strides = array<i32>} : memref<1x16x32xf32, #tpu.memory_space<vmem>>, vector<1x16x32xf32>,
    } else {
    }
    return
  }
  func.func @transform_0(%arg0: i32, %arg1: i32, %arg2: i32, %arg3: i32) -> (i32, i32, i32) {
    %c0_i32 = arith.constant 0 : i32
    return %arg0, %arg1, %arg3 : i32, i32, i32
  }
  func.func @transform_1(%arg0: i32, %arg1: i32, %arg2: i32, %arg3: i32) -> (i32, i32, i32) {
    %c0_i32 = arith.constant 0 : i32
    return %arg0, %arg3, %arg2 : i32, i32, i32
  }
  func.func @transform_2(%arg0: i32, %arg1: i32, %arg2: i32, %arg3: i32) -> (i32, i32, i32) {
    %c0_i32 = arith.constant 0 : i32
    %c0_i32_0 = arith.constant 0 : i32
    return %arg0, %c0_i32, %arg2 : i32, i32, i32
  }
  func.func @transform_3(%arg0: i32, %arg1: i32, %arg2: i32, %arg3: i32) -> (i32, i32, i32) {
    %c0_i32 = arith.constant 0 : i32
    return %arg0, %arg1, %arg2 : i32, i32, i32
  }
}

</mosaic_0001>

<llo_original>
// kernel: tpu_custom_call.1
$region0: #{tpu_custom_call.1}
  #allocation0 [shape = 'u32[]', space=smem, size = 0x4, offset = 0x4, fixed_abs, tag = 'smem constant byte address 0x4 - core index']
  #allocation1 [shape = 'u32[144,128]{1,0:T(1,128)}', space=vmem, size = 0x12000, scoped, tag = 'internal scratch']
  #allocation2 [shape = 'f32[16,32]{1,0:T(8,128)}', space=vmem, size = 0x2000, scoped, tag = 'scratch operand']
  %s0 = inlined_call_operand.hbm [shape: f32[3,16,32], index: 0, kind: input, shape index: {}]
  %s1 = inlined_call_operand.hbm [shape: f32[3,32,32], index: 1, kind: input, shape index: {}]
  %s2 = inlined_call_operand.hbm [shape: f32[3,1,32], index: 2, kind: input, shape index: {}]
  %s3 = inlined_call_operand.hbm [shape: f32[3,16,32], index: 3, kind: output, shape index: {}]
  %s4 = sld [smem:[#allocation0]]
  $region65: #{tpu_custom_call.1} parent=0
    _
  %s6 = ssub.s32 1, %s4
  %s7 = scalar_select 0, %s6, %s4
  $region1: #{tpu_custom_call.1} parent=0
    #allocation3 [shape = 'u8[16384]{0}', space=vmem, size = 0x4000, scoped, tag = 'input window, operand 0']
    #allocation4 [shape = 's32[2]{0}', space=sflag, size = 0x8, scoped, tag = 'scoped memory for tpu_custom_call.1']
    #allocation5 [shape = 's32[2]{0}', space=sflag, size = 0x8, scoped, tag = 'scoped memory for tpu_custom_call.1']
    #allocation6 [shape = 'u8[32768]{0}', space=vmem, size = 0x8000, scoped, tag = 'input window, operand 1']
    #allocation7 [shape = 's32[2]{0}', space=sflag, size = 0x8, scoped, tag = 'scoped memory for tpu_custom_call.1']
    #allocation8 [shape = 'u8[1024]{0}', space=vmem, size = 0x400, scoped, tag = 'input window, operand 2']
    #allocation9 [shape = 'u8[16384]{0}', space=vmem, size = 0x4000, scoped, tag = 'output window, operand 0']
    %8 = vsyncpa [#allocation4], 0
    %s9 = scalar_lea.sflag [#allocation4], 1
    %10 = vsyncpa %s9, 0
    %11 = vsyncpa [#allocation7], 0
    %s12 = scalar_lea.sflag [#allocation7], 1
    %13 = vsyncpa %s12, 0
    %14 = vsyncpa [#allocation5], 0
    %s15 = scalar_lea.sflag [#allocation5], 1
    %16 = vsyncpa %s15, 0
    loop: start=0, step=1, limit=5
    $region2: #{tpu_custom_call.1} parent=1 // loop_pre_header
      _
    $region3: #{tpu_custom_call.1} parent=1 // loop_header
      %s18 = sphi 0, %s22
      %p19 = scmp.ge.s32.totalorder %s18, 5
      %s25 = sphi 0, %s51
      %s26 = sphi 0, %s47
      %s27 = sphi 0, %s43
      %s28 = sphi 0, %s39
      %s29 = sphi 0, %s25
      %s30 = sphi 0, %s26
      %s31 = sphi 0, %s27
      %s32 = sphi 0, %s28
      %s33 = sphi 0, %s29
      %s34 = sphi 0, %s30
      %s35 = sphi 0, %s31
      %s36 = sphi 0, %s32
      %s58 = sphi 0, %s60
      %s61 = sphi 0, %s58
      %s62 = sphi 0, %s61
      %s78 = sphi 0, %s62
      %s88 = sphi 0, %s90
      %s91 = sphi 0, %s88
      %s92 = sphi 0, %s91
      %s108 = sphi 0, %s92
      %s116 = sphi 0, %s118
      %s119 = sphi 0, %s116
      %s120 = sphi 0, %s119
      %s136 = sphi 0, %s120
      %s146 = sphi 0, %s148
      %s149 = sphi 0, %s146
      %s150 = sphi 0, %s149
      %s166 = sphi 0, %s150
    $region4: #{tpu_custom_call.1} parent=1 // loop_header_branch
      %21 = sbr.rel (%p19) target = $region8
    $region5: #{tpu_custom_call.1} parent=1 // loop_body
      %s23 = ssub.s32 %s18, 1
      %s24 = ssub.s32 %s18, 2
      %s37 = sadd.s32 1, %s28
      %p38 = scmp.ge.s32.totalorder %s37, 1
      %s39 = scalar_select %p38, 0, %s37
      %s40 = sadd.s32 1, %s27
      %s41 = scalar_select %p38, %s40, %s27
      %p42 = scmp.ge.s32.totalorder %s41, 1
      %s43 = scalar_select %p42, 0, %s41
      %s44 = sadd.s32 1, %s26
      %s45 = scalar_select %p42, %s44, %s26
      %p46 = scmp.ge.s32.totalorder %s45, 1
      %s47 = scalar_select %p46, 0, %s45
      %s48 = sadd.s32 1, %s25
      %s49 = scalar_select %p46, %s48, %s25
      %p50 = scmp.ge.s32.totalorder %s49, 3
      %s51 = scalar_select %p50, 0, %s49
      %s52 = ssub.s32 %s25, %s51
      %s53 = ssub.s32 %s26, %s47
      %s54 = sor.u32 %s52, %s53
      %s55 = ssub.s32 %s28, %s39
      %s56 = sor.u32 %s54, %s55
      %p57 = scmp.eq.s32.totalorder %s56, 0
      %s59 = sadd.s32 %s58, 1
      %s60 = scalar_select %p57, %s58, %s59
      %p63 = pneg %p57
      %p64 = scmp.eq.s32.totalorder %s18, 2
      %p65 = por %p63, %p64
      %p66 = scmp.ne.s32.totalorder %s58, %s61
      %p67 = scmp.eq.s32.totalorder %s18, 0
      %p68 = por %p66, %p67
      %p69 = scmp.ne.s32.totalorder %s58, %s61
      %p70 = scmp.eq.s32.totalorder %s23, 2
      %p71 = por %p69, %p70
      %p72 = scmp.ne.s32.totalorder %s61, %s62
      %p73 = scmp.eq.s32.totalorder %s23, 0
      %p74 = por %p72, %p73
      %p75 = scmp.ne.s32.totalorder %s61, %s62
      %p76 = scmp.eq.s32.totalorder %s24, 2
      %p77 = por %p75, %p76
      %p79 = scmp.ne.s32.totalorder %s62, %s78
      %p80 = scmp.eq.s32.totalorder %s24, 0
      %p81 = por %p79, %p80
      %s82 = ssub.s32 %s25, %s51
      %s83 = ssub.s32 %s28, %s39
      %s84 = sor.u32 %s82, %s83
      %s85 = ssub.s32 %s27, %s43
      %s86 = sor.u32 %s84, %s85
      %p87 = scmp.eq.s32.totalorder %s86, 0
      %s89 = sadd.s32 %s88, 1
      %s90 = scalar_select %p87, %s88, %s89
      %p93 = pneg %p87
      %p94 = scmp.eq.s32.totalorder %s18, 2
      %p95 = por %p93, %p94
      %p96 = scmp.ne.s32.totalorder %s88, %s91
      %p97 = scmp.eq.s32.totalorder %s18, 0
      %p98 = por %p96, %p97
      %p99 = scmp.ne.s32.totalorder %s88, %s91
      %p100 = scmp.eq.s32.totalorder %s23, 2
      %p101 = por %p99, %p100
      %p102 = scmp.ne.s32.totalorder %s91, %s92
      %p103 = scmp.eq.s32.totalorder %s23, 0
      %p104 = por %p102, %p103
      %p105 = scmp.ne.s32.totalorder %s91, %s92
      %p106 = scmp.eq.s32.totalorder %s24, 2
      %p107 = por %p105, %p106
      %p109 = scmp.ne.s32.totalorder %s92, %s108
      %p110 = scmp.eq.s32.totalorder %s24, 0
      %p111 = por %p109, %p110
      %s112 = ssub.s32 %s25, %s51
      %s113 = ssub.s32 %s27, %s43
      %s114 = sor.u32 %s112, %s113
      %p115 = scmp.eq.s32.totalorder %s114, 0
      %s117 = sadd.s32 %s116, 1
      %s118 = scalar_select %p115, %s116, %s117
      %p121 = pneg %p115
      %p122 = scmp.eq.s32.totalorder %s18, 2
      %p123 = por %p121, %p122
      %p124 = scmp.ne.s32.totalorder %s116, %s119
      %p125 = scmp.eq.s32.totalorder %s18, 0
      %p126 = por %p124, %p125
      %p127 = scmp.ne.s32.totalorder %s116, %s119
      %p128 = scmp.eq.s32.totalorder %s23, 2
      %p129 = por %p127, %p128
      %p130 = scmp.ne.s32.totalorder %s119, %s120
      %p131 = scmp.eq.s32.totalorder %s23, 0
      %p132 = por %p130, %p131
      %p133 = scmp.ne.s32.totalorder %s119, %s120
      %p134 = scmp.eq.s32.totalorder %s24, 2
      %p135 = por %p133, %p134
      %p137 = scmp.ne.s32.totalorder %s120, %s136
      %p138 = scmp.eq.s32.totalorder %s24, 0
      %p139 = por %p137, %p138
      %s140 = ssub.s32 %s25, %s51
      %s141 = ssub.s32 %s26, %s47
      %s142 = sor.u32 %s140, %s141
      %s143 = ssub.s32 %s27, %s43
      %s144 = sor.u32 %s142, %s143
      %p145 = scmp.eq.s32.totalorder %s144, 0
      %s147 = sadd.s32 %s146, 1
      %s148 = scalar_select %p145, %s146, %s147
      %p151 = pneg %p145
      %p152 = scmp.eq.s32.totalorder %s18, 2
      %p153 = por %p151, %p152
      %p154 = scmp.ne.s32.totalorder %s146, %s149
      %p155 = scmp.eq.s32.totalorder %s18, 0
      %p156 = por %p154, %p155
      %p157 = scmp.ne.s32.totalorder %s146, %s149
      %p158 = scmp.eq.s32.totalorder %s23, 2
      %p159 = por %p157, %p158
      %p160 = scmp.ne.s32.totalorder %s149, %s150
      %p161 = scmp.eq.s32.totalorder %s23, 0
      %p162 = por %p160, %p161
      %p163 = scmp.ne.s32.totalorder %s149, %s150
      %p164 = scmp.eq.s32.totalorder %s24, 2
      %p165 = por %p163, %p164
      %p167 = scmp.ne.s32.totalorder %s150, %s166
      %p168 = scmp.eq.s32.totalorder %s24, 0
      %p169 = por %p167, %p168
      %p170 = scmp.le.s32.totalorder 1, %s18
      %p171 = scmp.lt.s32.totalorder %s18, 4
      %p172 = pnand %p170, %p171
      %p173 = pneg %p172
      // Predicated region
      $region9: #{tpu_custom_call.1} parent=5 // pred_check
        _
      $region10: #{tpu_custom_call.1} parent=5 // pred_check_branch
        %175 = sbr.rel (%p172) target = $region12
      $region11: #{tpu_custom_call.1} parent=5 // pred_region
        %s176 = ssub.s32 %s18, 1
      $region12: #{tpu_custom_call.1} parent=5 // pred_fallthru
        _
      %p177 = scmp.lt.s32.totalorder %s18, 3
      // Predicated region
      $region13: #{tpu_custom_call.1} parent=5 // pred_check
        %p178 = pneg %p177
      $region14: #{tpu_custom_call.1} parent=5 // pred_check_branch
        %180 = sbr.rel (%p178) target = $region16
      $region15: #{tpu_custom_call.1} parent=5 // pred_region
        // Predicated region
        $region17: #{tpu_custom_call.1} parent=15 // pred_check
          %p181 = pneg %p68
        $region18: #{tpu_custom_call.1} parent=15 // pred_check_branch
          %183 = sbr.rel (%p181) target = $region20
        $region19: #{tpu_custom_call.1} parent=15 // pred_region
          %s184 = sand.u32 %s58, 1
          %s185 = scalar_lea.sflag [#allocation4], %s184
          %s186 = sand.u32 %s58, 1
          %s187 = smul.addr %s186, 16
          %s188 = scalar_lea.vmem [#allocation3], %s187
          %s189 = smul.u32 2, %s26
          %s191 = ssub.s32 256, 256
          %192 = vsyncadd %s185, %s191
          %s193 = sadd.s32 %s28, %s189
          %s194 = smul.addr %s25, 2
          %s195 = sadd.s32 %s193, %s194
          %s196 = smul.addr %s195, 128
          %s197 = scalar_lea.hbm %s0, %s196
          %s198 = sshll.u32 %s188, 4
          %s199 = int_to_ptr.vmem [resolvable:$true] %s198
          %204 = dma.hbm_to_vmem [thread:$0]  %s197, 256, %s199, %s185, 128, 128, 8
        $region20: #{tpu_custom_call.1} parent=15 // pred_fallthru
          _
        // Predicated region
        $region21: #{tpu_custom_call.1} parent=15 // pred_check
          %p205 = pneg %p98
        $region22: #{tpu_custom_call.1} parent=15 // pred_check_branch
          %207 = sbr.rel (%p205) target = $region24
        $region23: #{tpu_custom_call.1} parent=15 // pred_region
          %s208 = sand.u32 %s18, 1
          %s209 = scalar_lea.sflag [#allocation7], %s208
          %s210 = sand.u32 %s88, 1
          %s211 = smul.addr %s210, 32
          %s212 = scalar_lea.vmem [#allocation6], %s211
          %s213 = smul.u32 4, %s28
          %s215 = ssub.s32 512, 512
          %216 = vsyncadd %s209, %s215
          %s217 = sadd.s32 %s27, %s213
          %s218 = smul.addr %s25, 4
          %s219 = sadd.s32 %s217, %s218
          %s220 = smul.addr %s219, 128
          %s221 = scalar_lea.hbm %s1, %s220
          %s222 = sshll.u32 %s212, 4
          %s223 = int_to_ptr.vmem [resolvable:$true] %s222
          %228 = dma.hbm_to_vmem [thread:$0]  %s221, 512, %s223, %s209, 128, 128, 8
        $region24: #{tpu_custom_call.1} parent=15 // pred_fallthru
          _
        // Predicated region
        $region25: #{tpu_custom_call.1} parent=15 // pred_check
          %p229 = pneg %p126
        $region26: #{tpu_custom_call.1} parent=15 // pred_check_branch
          %231 = sbr.rel (%p229) target = $region28
        $region27: #{tpu_custom_call.1} parent=15 // pred_region
          %s232 = sand.u32 %s18, 1
          %s233 = scalar_lea.sflag [#allocation7], %s232
          %s234 = sand.u32 %s116, 1
          %s235 = scalar_lea.vmem [#allocation8], %s234
          %s237 = ssub.s32 16, 16
          %238 = vsyncadd %s233, %s237
          %s239 = sadd.s32 %s27, %s25
          %s240 = smul.addr %s239, 16
          %s241 = scalar_lea.hbm %s2, %s240
          %s243 = sshll.u32 %s235, 4
          %s244 = int_to_ptr.vmem [resolvable:$true] %s243
          %246 = dma.hbm_to_vmem [thread:$0]  %s241, 16, %s244, %s233
        $region28: #{tpu_custom_call.1} parent=15 // pred_fallthru
          _
      $region16: #{tpu_custom_call.1} parent=5 // pred_fallthru
        _
      %p247 = scmp.le.s32.totalorder 1, %s18
      %p248 = scmp.lt.s32.totalorder %s18, 4
      %p249 = pnand %p247, %p248
      %p250 = pneg %p249
      // Predicated region
      $region29: #{tpu_custom_call.1} parent=5 // pred_check
        _
      $region30: #{tpu_custom_call.1} parent=5 // pred_check_branch
        %252 = sbr.rel (%p249) target = $region32
      $region31: #{tpu_custom_call.1} parent=5 // pred_region
        %s253 = ssub.s32 %s18, 1
        %s254 = sand.u32 %s61, 1
        %s255 = scalar_lea.sflag [#allocation4], %s254
        %s256 = sand.u32 %s61, 1
        %s257 = smul.addr %s256, 16
        %s258 = scalar_lea.vmem [#allocation3], %s257
        // Predicated region
        $region33: #{tpu_custom_call.1} parent=31 // pred_check
          %p259 = pneg %p74
        $region34: #{tpu_custom_call.1} parent=31 // pred_check_branch
          %261 = sbr.rel (%p259) target = $region36
        $region35: #{tpu_custom_call.1} parent=31 // pred_region
          %262 = dma.done %s255, 256
        $region36: #{tpu_custom_call.1} parent=31 // pred_fallthru
          _
        %s263 = sand.u32 %s23, 1
        %s264 = scalar_lea.sflag [#allocation7], %s263
        %s265 = sand.u32 %s91, 1
        %s266 = smul.addr %s265, 32
        %s267 = scalar_lea.vmem [#allocation6], %s266
        // Predicated region
        $region37: #{tpu_custom_call.1} parent=31 // pred_check
          %p268 = pneg %p104
        $region38: #{tpu_custom_call.1} parent=31 // pred_check_branch
          %270 = sbr.rel (%p268) target = $region40
        $region39: #{tpu_custom_call.1} parent=31 // pred_region
          %271 = dma.done %s264, 512
        $region40: #{tpu_custom_call.1} parent=31 // pred_fallthru
          _
        %s272 = sand.u32 %s23, 1
        %s273 = scalar_lea.sflag [#allocation7], %s272
        %s274 = sand.u32 %s119, 1
        %s275 = scalar_lea.vmem [#allocation8], %s274
        // Predicated region
        $region41: #{tpu_custom_call.1} parent=31 // pred_check
          %p276 = pneg %p132
        $region42: #{tpu_custom_call.1} parent=31 // pred_check_branch
          %278 = sbr.rel (%p276) target = $region44
        $region43: #{tpu_custom_call.1} parent=31 // pred_region
          %279 = dma.done %s273, 16
        $region44: #{tpu_custom_call.1} parent=31 // pred_fallthru
          _
        %s280 = sand.u32 %s61, 1
        %s281 = scalar_lea.sflag [#allocation4], %s280
        %s282 = sand.u32 %s61, 1
        %s283 = smul.addr %s282, 16
        %s284 = scalar_lea.vmem [#allocation3], %s283
        %p285 = pneg %p74
        %p286 = pneg %p71
        %s287 = sand.u32 %s23, 1
        %s288 = scalar_lea.sflag [#allocation7], %s287
        %s289 = sand.u32 %s91, 1
        %s290 = smul.addr %s289, 32
        %s291 = scalar_lea.vmem [#allocation6], %s290
        %p292 = pneg %p104
        %p293 = pneg %p101
        %s294 = sand.u32 %s23, 1
        %s295 = scalar_lea.sflag [#allocation7], %s294
        %s296 = sand.u32 %s119, 1
        %s297 = scalar_lea.vmem [#allocation8], %s296
        %p298 = pneg %p132
        %p299 = pneg %p129
        %p300 = pneg %p162
        %p301 = pneg %p159
        %s302 = sand.u32 %s149, 1
        %s303 = scalar_lea.sflag [#allocation5], %s302
        %s304 = sand.u32 %s149, 1
        %s305 = smul.addr %s304, 16
        %s306 = scalar_lea.vmem [#allocation9], %s305
        %s307 = smul.u32 2, %s30
        %s308 = smul.u32 4, %s32
        %s309 = smul.u32 2, %s30
        %p310 = scmp.eq.s32.totalorder %s32, 0
        // Predicated region
        $region45: #{tpu_custom_call.1} parent=31 // pred_check
          %p311 = pneg %p310
        $region46: #{tpu_custom_call.1} parent=31 // pred_check_branch
          %313 = sbr.rel (%p311) target = $region48
        $region47: #{tpu_custom_call.1} parent=31 // pred_region
          %vm314 = vcmask 261120
          %315 = vst.msk [vmem:[#allocation2] sm:$0xff] %vm314, 0.0
          %316 = vst.msk [vmem:[#allocation2 + $0x8] sm:$0xff] %vm314, 0.0
        $region48: #{tpu_custom_call.1} parent=31 // pred_fallthru
          _
        %v317 = vld [vmem:[#allocation2] sm:$0xff]
        %v318 = vld [vmem:[#allocation2 + $0x8] sm:$0xff]
        %v319 = vld [vmem:[%s258] sm:$0xff]
        %v320 = vld [vmem:[%s258 + $0x8] sm:$0xff]
        %v321 = vld [vmem:[%s267] sm:$0xff]
        %v322 = vld [vmem:[%s267 + $0x8] sm:$0xff]
        %v323 = vld [vmem:[%s267 + $0x10] sm:$0xff]
        %v324 = vld [vmem:[%s267 + $0x18] sm:$0xff]
        %vm325 = vcmask 261120
        %v327 = vsel %vm325, %v319, 0
        %v330 = vsel %vm325, %v320, 0
        %332 = vmatprep.subr.mxu0 0.0
        %333 = vmatpush1.msra.mxu0 %v321
        %334 = vmatprep.subr.mxu0 0.0
        %335 = vmatpush1.msra.mxu0 %v322
        %336 = vmatprep.subr.mxu0 0.0
        %337 = vmatpush1.msra.mxu0 %v323
        %338 = vmatprep.subr.mxu0 0.0
        %339 = vmatpush1.msra.mxu0 %v324
        %340 = vmatprep.subr.mxu0 0.0
        %341 = vmatpush1.msra.mxu0 0.0
        %342 = vmatprep.subr.mxu0 0.0
        %343 = vmatpush1.msra.mxu0 0.0
        %344 = vmatprep.subr.mxu0 0.0
        %345 = vmatpush1.msra.mxu0 0.0
        %346 = vmatprep.subr.mxu0 0.0
        %347 = vmatpush1.msra.mxu0 0.0
        %348 = vmatprep.subr.mxu0 0.0
        %349 = vmatpush1.msra.mxu0 0.0
        %350 = vmatprep.subr.mxu0 0.0
        %351 = vmatpush1.msra.mxu0 0.0
        %352 = vmatprep.subr.mxu0 0.0
        %353 = vmatpush1.msra.mxu0 0.0
        %354 = vmatprep.subr.mxu0 0.0
        %355 = vmatpush1.msra.mxu0 0.0
        %356 = vmatprep.subr.mxu0 0.0
        %357 = vmatpush1.msra.mxu0 0.0
        %358 = vmatprep.subr.mxu0 0.0
        %359 = vmatpush1.msra.mxu0 0.0
        %360 = vmatprep.subr.mxu0 0.0
        %361 = vmatpush1.msra.mxu0 0.0
        %362 = vmatprep.subr.mxu0 0.0
        %363 = vmatpush1.msra.mxu0 0.0
        %364 = vmatprep.subr.mxu0 0.0
        %365 = vmatpush1.msra.mxu0 0.0
        %366 = vmatprep.subr.mxu0 0.0
        %367 = vmatpush1.msra.mxu0 0.0
        %368 = vmatprep.subr.mxu0 0.0
        %369 = vmatpush1.msra.mxu0 0.0
        %370 = vmatprep.subr.mxu0 0.0
        %371 = vmatpush1.msra.mxu0 0.0
        %372 = vmatprep.subr.mxu0 0.0
        %373 = vmatpush1.msra.mxu0 0.0
        %374 = vmatprep.subr.mxu0 0.0
        %375 = vmatpush1.msra.mxu0 0.0
        %376 = vmatprep.subr.mxu0 0.0
        %377 = vmatpush1.msra.mxu0 0.0
        %378 = vmatprep.subr.mxu0 0.0
        %379 = vmatpush1.msra.mxu0 0.0
        %380 = vmatprep.subr.mxu0 0.0
        %381 = vmatpush1.msra.mxu0 0.0
        %382 = vmatprep.subr.mxu0 0.0
        %383 = vmatpush1.msra.mxu0 0.0
        %384 = vmatprep.subr.mxu0 0.0
        %385 = vmatpush1.msra.mxu0 0.0
        %386 = vmatprep.subr.mxu0 0.0
        %387 = vmatpush1.msra.mxu0 0.0
        %388 = vmatprep.subr.mxu0 0.0
        %389 = vmatpush1.msra.mxu0 0.0
        %390 = vmatprep.subr.mxu0 0.0
        %391 = vmatpush1.msra.mxu0 0.0
        %392 = vmatprep.subr.mxu0 0.0
        %393 = vmatpush1.msra.mxu0 0.0
        %394 = vmatprep.subr.mxu0 0.0
        %395 = vmatpush1.msra.mxu0 0.0
        %396 = vmatprep.mubr.f32.mxu0 0.0
        %397 = vmatmul.mubr.f32.gmra.mrb[0].mxu0 %v327
        %v398 = vpop.f32.mrb[0].mxu0
        %v399 = vadd.f32 0.0, %v398
        %v400 = vpop.f32.mrb[0].mxu0
        %401 = vmatprep.mubr.f32.mxu0 0.0
        %402 = vmatmul.mubr.f32.gmra.mrb[0].mxu0 %v330
        %v403 = vpop.f32.mrb[0].mxu0
        %v404 = vadd.f32 0.0, %v403
        %v405 = vpop.f32.mrb[0].mxu0
        %406 = vdwg.mxu0
        %v407 = vadd.f32 %v317, %v399
        %v408 = vadd.f32 %v318, %v404
        %409 = vst.msk [vmem:[#allocation2] sm:$0xff] %vm325, %v407
        %410 = vst.msk [vmem:[#allocation2 + $0x8] sm:$0xff] %vm325, %v408
        // Predicated region
        $region49: #{tpu_custom_call.1} parent=31 // pred_check
          %p411 = pneg %p310
        $region50: #{tpu_custom_call.1} parent=31 // pred_check_branch
          %413 = sbr.rel (%p411) target = $region52
        $region51: #{tpu_custom_call.1} parent=31 // pred_region
          %v414 = vld [vmem:[#allocation2] sm:$0xff]
          %v415 = vld [vmem:[#allocation2 + $0x8] sm:$0xff]
          %v416 = vld [vmem:[%s275] sm:$0x1]
          %v418 = vlaneseq
          %v419 = vshrl.u32 %v418, 7
          %v420 = vsub.s32 0, %v419
          %v421 = vrot.slane %v416, %v420
          %v423 = vadd.f32 %v414, %v421
          %v424 = vadd.f32 %v415, %v421
          %425 = vst.msk [vmem:[%s306] sm:$0xff] %vm325, %v423
          %426 = vst.msk [vmem:[%s306 + $0x8] sm:$0xff] %vm325, %v424
        $region52: #{tpu_custom_call.1} parent=31 // pred_fallthru
          _
        %s427 = sand.u32 %s149, 1
        %s428 = scalar_lea.sflag [#allocation5], %s427
        %s429 = sand.u32 %s149, 1
        %s430 = smul.addr %s429, 16
        %s431 = scalar_lea.vmem [#allocation9], %s430
        // Predicated region
        $region53: #{tpu_custom_call.1} parent=31 // pred_check
          %p432 = pneg %p159
        $region54: #{tpu_custom_call.1} parent=31 // pred_check_branch
          %434 = sbr.rel (%p432) target = $region56
        $region55: #{tpu_custom_call.1} parent=31 // pred_region
          %s435 = smul.u32 2, %s30
          %s437 = ssub.s32 256, 256
          %438 = vsyncadd %s428, %s437
          %s439 = sadd.s32 %s31, %s435
          %s440 = smul.addr %s29, 2
          %s441 = sadd.s32 %s439, %s440
          %s442 = smul.addr %s441, 128
          %s443 = scalar_lea.hbm %s3, %s442
          %s444 = sshll.u32 %s431, 4
          %s445 = int_to_ptr.vmem [resolvable:$true] %s444
          %450 = dma.vmem_to_hbm [thread:$0]  %s445, 256, %s443, %s428, 128, 128, 8
        $region56: #{tpu_custom_call.1} parent=31 // pred_fallthru
          _
      $region32: #{tpu_custom_call.1} parent=5 // pred_fallthru
        _
      %p451 = scmp.le.s32.totalorder 2, %s18
      // Predicated region
      $region57: #{tpu_custom_call.1} parent=5 // pred_check
        %p452 = pneg %p451
      $region58: #{tpu_custom_call.1} parent=5 // pred_check_branch
        %454 = sbr.rel (%p452) target = $region60
      $region59: #{tpu_custom_call.1} parent=5 // pred_region
        %s455 = ssub.s32 %s18, 2
        // Predicated region
        $region61: #{tpu_custom_call.1} parent=59 // pred_check
          %p456 = pneg %p165
        $region62: #{tpu_custom_call.1} parent=59 // pred_check_branch
          %458 = sbr.rel (%p456) target = $region64
        $region63: #{tpu_custom_call.1} parent=59 // pred_region
          %s459 = sand.u32 %s150, 1
          %s460 = scalar_lea.sflag [#allocation5], %s459
          %s461 = sand.u32 %s150, 1
          %s462 = smul.addr %s461, 16
          %s463 = scalar_lea.vmem [#allocation9], %s462
          %464 = dma.done %s460, 256
        $region64: #{tpu_custom_call.1} parent=59 // pred_fallthru
          _
      $region60: #{tpu_custom_call.1} parent=5 // pred_fallthru
        _
    $region6: #{tpu_custom_call.1} parent=1 // loop_footer
      %s22 = sadd.s32 1, %s18
    $region7: #{tpu_custom_call.1} parent=1 // loop_footer_branch
      %17 = sbr.rel target = $region3
    $region8: #{tpu_custom_call.1} parent=1 // loop_exit
      _
    %465 = vsyncpa [#allocation4], 1
    %s466 = scalar_lea.sflag [#allocation4], 1
    %467 = vsyncpa %s466, 1
    %468 = vsyncpa [#allocation7], 1
    %s469 = scalar_lea.sflag [#allocation7], 1
    %470 = vsyncpa %s469, 1
    %471 = vsyncpa [#allocation5], 1
    %s472 = scalar_lea.sflag [#allocation5], 1
    %473 = vsyncpa %s472, 1

</llo_original>
